<compile_context>
chip_gen: v7x
topology: tpu7x:2x2x1
jax: 0.10.0
libtpu: 0.0.40
codegen_flags: <defaults>
</compile_context>

<pallas_src>
import functools

import jax
import jax.numpy as jnp
from jax.experimental import pallas as pl
from jax.experimental.pallas import tpu as pltpu


def _round_up(x, m):
    return (x + m - 1) // m * m


def _pick_tile(size, target, granule=128):
    """Pick a tile (multiple of `granule`, <= padded size) and padded total."""
    padded_min = _round_up(size, granule)
    tile = min(_round_up(target, granule), padded_min)
    padded = _round_up(padded_min, tile)
    return tile, padded


def _conv_matmul_kernel(w_ref, x_ref, b_ref, o_ref, acc_ref):
    # w_ref:   (TILE_O, TILE_K)  bf16   weight tile
    # x_ref:   (TILE_K, TILE_P)  bf16   im2col patch tile (batch dim squeezed)
    # b_ref:   (TILE_O, 1)       f32    bias column tile
    # o_ref:   (TILE_O, TILE_P)  f32    output tile (batch dim squeezed)
    # acc_ref: (TILE_O, TILE_P)  f32    accumulator scratch
    k = pl.program_id(3)

    @pl.when(k == 0)
    def _():
        acc_ref[...] = jnp.zeros_like(acc_ref)

    acc_ref[...] += jnp.dot(w_ref[...], x_ref[...],
                            preferred_element_type=jnp.float32)

    @pl.when(k == pl.num_programs(3) - 1)
    def _():
        o_ref[...] = (acc_ref[...] + b_ref[...]).astype(o_ref.dtype)


def _im2col(x, kernel_size, stride, padding, dilation):
    """JAX equivalent of F.pad + F.unfold with PyTorch's (C, kh, kw) ordering."""
    B, C, H, W = x.shape
    kh, kw = kernel_size
    sh, sw = stride
    ph, pw = padding
    dh, dw = dilation

    xp = jnp.pad(x, ((0, 0), (0, 0), (ph, ph), (pw, pw)))
    Ho = (H + 2 * ph - dh * (kh - 1) - 1) // sh + 1
    Wo = (W + 2 * pw - dw * (kw - 1) - 1) // sw + 1

    cols = []
    for i in range(kh):
        for j in range(kw):
            r0 = i * dh
            c0 = j * dw
            patch = xp[:, :,
                       r0:r0 + (Ho - 1) * sh + 1:sh,
                       c0:c0 + (Wo - 1) * sw + 1:sw]  # (B, C, Ho, Wo)
            cols.append(patch)
    # (B, C, kh*kw, Ho, Wo) -> (B, C*kh*kw, Ho*Wo)  [channel-major, like F.unfold]
    col = jnp.stack(cols, axis=2).reshape(B, C * kh * kw, Ho * Wo)
    return col, Ho, Wo


@functools.partial(
    jax.jit,
    static_argnames=("kernel_size", "stride", "padding", "dilation",
                     "tile_o", "tile_p", "tile_k"))
def conv2d_pallas(x, weights, bias, *, kernel_size, stride, padding, dilation,
                  tile_o=256, tile_p=1024, tile_k=512):
    """x: (B, C, H, W) NCHW; weights: (O, C, kh, kw); bias: (O,) or None."""
    B, C, H, W = x.shape
    O = weights.shape[0]
    kh, kw = kernel_size

    compute_dtype = jnp.bfloat16   # MXU peak dtype; accumulation stays f32.
    out_dtype = jnp.float32

    # im2col in the compute dtype (halves HBM traffic of the patch tensor).
    patches, Ho, Wo = _im2col(x.astype(compute_dtype), kernel_size, stride,
                              padding, dilation)
    K = C * kh * kw
    P = Ho * Wo

    TILE_O, O_pad = _pick_tile(O, tile_o)
    TILE_K, K_pad = _pick_tile(K, tile_k)
    TILE_P, P_pad = _pick_tile(P, tile_p)

    # Pad to tile multiples with jnp.pad (zeros do not change the valid region).
    w_flat = weights.reshape(O, K).astype(compute_dtype)
    w_p = jnp.pad(w_flat, ((0, O_pad - O), (0, K_pad - K)))
    b_col = bias if bias is not None else jnp.zeros((O,), jnp.float32)
    b_p = jnp.pad(b_col.astype(jnp.float32).reshape(O, 1),
                  ((0, O_pad - O), (0, 0)))
    x_p = jnp.pad(patches, ((0, 0), (0, K_pad - K), (0, P_pad - P)))

    grid = (B, O_pad // TILE_O, P_pad // TILE_P, K_pad // TILE_K)

    # VMEM budget: double-buffered in/out tiles + f32 accumulator + headroom.
    cbytes = jnp.dtype(compute_dtype).itemsize
    obytes = jnp.dtype(out_dtype).itemsize
    tile_bytes = (TILE_O * TILE_K * cbytes        # weight tile
                  + TILE_K * TILE_P * cbytes      # patch tile
                  + TILE_O * 128 * 4              # bias column (lane-padded)
                  + TILE_O * TILE_P * obytes)     # output tile
    needed = 2 * tile_bytes + TILE_O * TILE_P * 4
    vmem_limit = int(min(max(2 * needed + (4 << 20), 32 << 20), 64 << 20))

    out_p = pl.pallas_call(
        _conv_matmul_kernel,
        out_shape=jax.ShapeDtypeStruct((B, O_pad, P_pad), out_dtype),
        grid_spec=pltpu.PrefetchScalarGridSpec(
            num_scalar_prefetch=0,
            grid=grid,
            in_specs=[
                pl.BlockSpec((TILE_O, TILE_K),
                             lambda b, o, p, k: (o, k)),
                pl.BlockSpec((pl.Squeezed(), TILE_K, TILE_P),
                             lambda b, o, p, k: (b, k, p)),
                pl.BlockSpec((TILE_O, 1),
                             lambda b, o, p, k: (o, 0)),
            ],
            out_specs=pl.BlockSpec((pl.Squeezed(), TILE_O, TILE_P),
                                   lambda b, o, p, k: (b, o, p)),
            scratch_shapes=[pltpu.VMEM((TILE_O, TILE_P), jnp.float32)],
        ),
        compiler_params=pltpu.CompilerParams(
            dimension_semantics=("parallel", "parallel", "parallel",
                                 "arbitrary"),
            vmem_limit_bytes=vmem_limit),
    )(w_p, x_p, b_p)

    out = out_p[:, :O, :P].reshape(B, O, Ho, Wo)
    return out


if __name__ == "__main__":
    # Module config (small, consistent with the PyTorch Conv2d module).
    in_channels, out_channels = 4, 8
    kernel_size = (3, 3)
    stride = (1, 1)
    padding = (1, 1)
    dilation = (1, 1)

    key = jax.random.PRNGKey(0)
    kx, kw_, kb = jax.random.split(key, 3)

    x = jax.random.normal(kx, (2, in_channels, 16, 16), dtype=jnp.float32)
    weights = jax.random.normal(
        kw_, (out_channels, in_channels, *kernel_size), dtype=jnp.float32)
    bias = jax.random.normal(kb, (out_channels,), dtype=jnp.float32)

    out = conv2d_pallas(x, weights, bias,
                        kernel_size=kernel_size, stride=stride,
                        padding=padding, dilation=dilation)
    out = jax.block_until_ready(out)
    assert out.shape == (2, out_channels, 16, 16), out.shape

    # Reference 1: same math path (im2col + einsum) with bf16-rounded operands
    # and f32 accumulation -> should match the kernel tightly.
    patches_ref, Ho, Wo = _im2col(x, kernel_size, stride, padding, dilation)
    w_flat = weights.reshape(out_channels, -1)
    ref_bf16 = jnp.einsum(
        "ok,bkp->bop",
        w_flat.astype(jnp.bfloat16).astype(jnp.float32),
        patches_ref.astype(jnp.bfloat16).astype(jnp.float32),
        precision=jax.lax.Precision.HIGHEST) + bias.reshape(1, -1, 1)
    ref_bf16 = ref_bf16.reshape(2, out_channels, Ho, Wo)
    assert jnp.allclose(out, ref_bf16, atol=1e-3, rtol=1e-3), (
        float(jnp.max(jnp.abs(out - ref_bf16))))

    # Reference 2: full-f32 conv (semantics check; loose tolerance because the
    # kernel casts operands to bf16 before the MXU).
    ref_f32 = jax.lax.conv_general_dilated(
        x, weights, window_strides=stride, padding=[padding, padding],
        rhs_dilation=dilation,
        dimension_numbers=("NCHW", "OIHW", "NCHW"),
        precision=jax.lax.Precision.HIGHEST) + bias.reshape(1, -1, 1, 1)
    assert jnp.allclose(out, ref_f32, atol=0.5, rtol=0.1), (
        float(jnp.max(jnp.abs(out - ref_f32))))

    print("KERNEL_OK")
</pallas_src>

<mosaic_0001>
module attributes {stable_mosaic.version = 11 : i64} {
  func.func @_conv_matmul_kernel(%arg0: i32, %arg1: i32, %arg2: i32, %arg3: i32, %arg4: memref<128x128xbf16, #tpu.memory_space<vmem>>, %arg5: memref<1x128x256xbf16, #tpu.memory_space<vmem>>, %arg6: memref<128x1xf32, #tpu.memory_space<vmem>>, %arg7: memref<1x128x256xf32, #tpu.memory_space<vmem>>, %arg8: memref<128x256xf32, #tpu.memory_space<vmem>>) attributes {dimension_semantics = [#tpu.dimension_semantics<parallel>, #tpu.dimension_semantics<parallel>, #tpu.dimension_semantics<parallel>, #tpu.dimension_semantics<arbitrary>], iteration_bounds = array<i64: 2, 1, 1, 1>, scalar_prefetch = 0 : i64, scratch_operands = 1 : i64, tpu.core_type = #tpu.core_type<tc>, window_params = [{transform_indices = @transform_0, window_bounds = array<i64: 128, 128>}, {transform_indices = @transform_1, window_bounds = array<i64: 1, 128, 256>}, {transform_indices = @transform_2, window_bounds = array<i64: 128, 1>}, {transform_indices = @transform_3, window_bounds = array<i64: 1, 128, 256>}]} {
    %c0_i32 = arith.constant 0 : i32
    %0 = arith.cmpi eq, %arg3, %c0_i32 : i32
    %1 = arith.extui %0 : i1 to i32
    %c0_i32_0 = arith.constant 0 : i32
    %2 = arith.cmpi ne, %1, %c0_i32_0 : i32
    scf.if %2 {
      %cst_11 = arith.constant 0.000000e+00 : f32
      %13 = vector.broadcast %cst_11 : f32 to vector<128x256xf32>
      %c0_12 = arith.constant 0 : index
      %c0_13 = arith.constant 0 : index
      %14 = vector.load %arg8[%c0_12, %c0_13] : memref<128x256xf32, #tpu.memory_space<vmem>>, vector<128x256xf32>
      tpu.vector_store %arg8[%c0_12, %c0_13], %13 {strides = array<i32>} : memref<128x256xf32, #tpu.memory_space<vmem>>, vector<128x256xf32>,
    } else {
    }
    %c0 = arith.constant 0 : index
    %c0_1 = arith.constant 0 : index
    %3 = vector.load %arg8[%c0, %c0_1] : memref<128x256xf32, #tpu.memory_space<vmem>>, vector<128x256xf32>
    %c0_2 = arith.constant 0 : index
    %c0_3 = arith.constant 0 : index
    %4 = vector.load %arg4[%c0_2, %c0_3] : memref<128x128xbf16, #tpu.memory_space<vmem>>, vector<128x128xbf16>
    %c0_4 = arith.constant 0 : index
    %c0_5 = arith.constant 0 : index
    %c0_6 = arith.constant 0 : index
    %5 = vector.load %arg5[%c0_4, %c0_5, %c0_6] : memref<1x128x256xbf16, #tpu.memory_space<vmem>>, vector<1x128x256xbf16>
    %6 = vector.shape_cast %5 : vector<1x128x256xbf16> to vector<128x256xbf16>
    %cst = arith.constant dense<0.000000e+00> : vector<128x256xf32>
    %7 = tpu.matmul %4, %6, %cst {dimension_numbers = #tpu.dot_dimension_numbers<[1], [0], [0], [1], [0, 0, 1, 1], [], []>} : vector<128x128xbf16>, vector<128x256xbf16>, vector<128x256xf32> -> vector<128x256xf32>
    %8 = arith.addf %3, %7 : vector<128x256xf32>
    %c0_7 = arith.constant 0 : index
    %c0_8 = arith.constant 0 : index
    %9 = vector.load %arg8[%c0_7, %c0_8] : memref<128x256xf32, #tpu.memory_space<vmem>>, vector<128x256xf32>
    tpu.vector_store %arg8[%c0_7, %c0_8], %8 {strides = array<i32>} : memref<128x256xf32, #tpu.memory_space<vmem>>, vector<128x256xf32>,
    %c0_i32_9 = arith.constant 0 : i32
    %10 = arith.cmpi eq, %arg3, %c0_i32_9 : i32
    %11 = arith.extui %10 : i1 to i32
    %c0_i32_10 = arith.constant 0 : i32
    %12 = arith.cmpi ne, %11, %c0_i32_10 : i32
    scf.if %12 {
      %c0_11 = arith.constant 0 : index
      %c0_12 = arith.constant 0 : index
      %13 = vector.load %arg8[%c0_11, %c0_12] : memref<128x256xf32, #tpu.memory_space<vmem>>, vector<128x256xf32>
      %c0_13 = arith.constant 0 : index
      %c0_14 = arith.constant 0 : index
      %14 = vector.load %arg6[%c0_13, %c0_14] : memref<128x1xf32, #tpu.memory_space<vmem>>, vector<128x1xf32>
      %15 = vector.broadcast %14 : vector<128x1xf32> to vector<128x256xf32>
      %16 = arith.addf %13, %15 : vector<128x256xf32>
      %c0_15 = arith.constant 0 : index
      %c0_16 = arith.constant 0 : index
      %c0_17 = arith.constant 0 : index
      %17 = vector.load %arg7[%c0_15, %c0_16, %c0_17] : memref<1x128x256xf32, #tpu.memory_space<vmem>>, vector<1x128x256xf32>
      %18 = vector.shape_cast %17 : vector<1x128x256xf32> to vector<128x256xf32>
      %19 = vector.shape_cast %16 : vector<128x256xf32> to vector<1x128x256xf32>
      tpu.vector_store %arg7[%c0_15, %c0_16, %c0_17], %19 {strides = array<i32>} : memref<1x128x256xf32, #tpu.memory_space<vmem>>, vector<1x128x256xf32>,
    } else {
    }
    return
  }
  func.func @transform_0(%arg0: i32, %arg1: i32, %arg2: i32, %arg3: i32) -> (i32, i32) {
    %c0_i32 = arith.constant 0 : i32
    return %arg1, %arg3 : i32, i32
  }
  func.func @transform_1(%arg0: i32, %arg1: i32, %arg2: i32, %arg3: i32) -> (i32, i32, i32) {
    %c0_i32 = arith.constant 0 : i32
    return %arg0, %arg3, %arg2 : i32, i32, i32
  }
  func.func @transform_2(%arg0: i32, %arg1: i32, %arg2: i32, %arg3: i32) -> (i32, i32) {
    %c0_i32 = arith.constant 0 : i32
    %c0_i32_0 = arith.constant 0 : i32
    return %arg1, %c0_i32 : i32, i32
  }
  func.func @transform_3(%arg0: i32, %arg1: i32, %arg2: i32, %arg3: i32) -> (i32, i32, i32) {
    %c0_i32 = arith.constant 0 : i32
    return %arg0, %arg1, %arg2 : i32, i32, i32
  }
}

</mosaic_0001>

<llo_original>
// kernel: conv2d_pallas.1
$region0: #{conv2d_pallas.1}
  #allocation0 [shape = 'u32[]', space=smem, size = 0x4, offset = 0x4, fixed_abs, tag = 'smem constant byte address 0x4 - core index']
  #allocation1 [shape = 'u32[144,128]{1,0:T(1,128)}', space=vmem, size = 0x12000, scoped, tag = 'internal scratch']
  #allocation2 [shape = 'f32[128,256]{1,0:T(8,128)}', space=vmem, size = 0x20000, scoped, tag = 'scratch operand']
  %s0 = inlined_call_operand.vmem [shape: bf16[128,128], index: 0, kind: input, shape index: {}]
  %s1 = inlined_call_operand.vmem [shape: bf16[2,128,256], index: 1, kind: input, shape index: {}]
  %s2 = inlined_call_operand.vmem [shape: f32[128,1], index: 2, kind: input, shape index: {}]
  %s3 = inlined_call_operand.vmem [shape: f32[2,128,256], index: 3, kind: output, shape index: {}]
  %s4 = sld [smem:[#allocation0]]
  $region53: #{conv2d_pallas.1} parent=0
    _
  %s6 = ssub.s32 1, %s4
  %s7 = scalar_select 0, %s6, %s4
  loop: start=0, step=1, limit=4
  $region2: #{conv2d_pallas.1} parent=0 // loop_pre_header
    _
  $region3: #{conv2d_pallas.1} parent=0 // loop_header
    %s9 = sphi 0, %s13
    %p10 = scmp.ge.s32.totalorder %s9, 4
    %s16 = sphi 0, %s42
    %s17 = sphi 0, %s38
    %s18 = sphi 0, %s34
    %s19 = sphi 0, %s30
    %s20 = sphi 0, %s16
    %s21 = sphi 0, %s17
    %s22 = sphi 0, %s18
    %s23 = sphi 0, %s19
    %s24 = sphi 0, %s20
    %s25 = sphi 0, %s21
    %s26 = sphi 0, %s22
    %s27 = sphi 0, %s23
    %s47 = sphi 0, %s49
    %s50 = sphi 0, %s47
    %s51 = sphi 0, %s50
    %s67 = sphi 0, %s51
    %s77 = sphi 0, %s79
    %s80 = sphi 0, %s77
    %s81 = sphi 0, %s80
    %s97 = sphi 0, %s81
    %s103 = sphi 0, %s105
    %s106 = sphi 0, %s103
    %s107 = sphi 0, %s106
    %s123 = sphi 0, %s107
    %s133 = sphi 0, %s135
    %s136 = sphi 0, %s133
    %s137 = sphi 0, %s136
    %s153 = sphi 0, %s137
  $region4: #{conv2d_pallas.1} parent=0 // loop_header_branch
    %12 = sbr.rel (%p10) target = $region8
  $region5: #{conv2d_pallas.1} parent=0 // loop_body
    %s14 = ssub.s32 %s9, 1
    %s15 = ssub.s32 %s9, 2
    %s28 = sadd.s32 1, %s19
    %p29 = scmp.ge.s32.totalorder %s28, 1
    %s30 = scalar_select %p29, 0, %s28
    %s31 = sadd.s32 1, %s18
    %s32 = scalar_select %p29, %s31, %s18
    %p33 = scmp.ge.s32.totalorder %s32, 1
    %s34 = scalar_select %p33, 0, %s32
    %s35 = sadd.s32 1, %s17
    %s36 = scalar_select %p33, %s35, %s17
    %p37 = scmp.ge.s32.totalorder %s36, 1
    %s38 = scalar_select %p37, 0, %s36
    %s39 = sadd.s32 1, %s16
    %s40 = scalar_select %p37, %s39, %s16
    %p41 = scmp.ge.s32.totalorder %s40, 2
    %s42 = scalar_select %p41, 0, %s40
    %s43 = ssub.s32 %s17, %s38
    %s44 = ssub.s32 %s19, %s30
    %s45 = sor.u32 %s43, %s44
    %p46 = scmp.eq.s32.totalorder %s45, 0
    %s48 = sadd.s32 %s47, 1
    %s49 = scalar_select %p46, %s47, %s48
    %p52 = pneg %p46
    %p53 = scmp.eq.s32.totalorder %s9, 1
    %p54 = por %p52, %p53
    %p55 = scmp.ne.s32.totalorder %s47, %s50
    %p56 = scmp.eq.s32.totalorder %s9, 0
    %p57 = por %p55, %p56
    %p58 = scmp.ne.s32.totalorder %s47, %s50
    %p59 = scmp.eq.s32.totalorder %s14, 1
    %p60 = por %p58, %p59
    %p61 = scmp.ne.s32.totalorder %s50, %s51
    %p62 = scmp.eq.s32.totalorder %s14, 0
    %p63 = por %p61, %p62
    %p64 = scmp.ne.s32.totalorder %s50, %s51
    %p65 = scmp.eq.s32.totalorder %s15, 1
    %p66 = por %p64, %p65
    %p68 = scmp.ne.s32.totalorder %s51, %s67
    %p69 = scmp.eq.s32.totalorder %s15, 0
    %p70 = por %p68, %p69
    %s71 = ssub.s32 %s16, %s42
    %s72 = ssub.s32 %s19, %s30
    %s73 = sor.u32 %s71, %s72
    %s74 = ssub.s32 %s18, %s34
    %s75 = sor.u32 %s73, %s74
    %p76 = scmp.eq.s32.totalorder %s75, 0
    %s78 = sadd.s32 %s77, 1
    %s79 = scalar_select %p76, %s77, %s78
    %p82 = pneg %p76
    %p83 = scmp.eq.s32.totalorder %s9, 1
    %p84 = por %p82, %p83
    %p85 = scmp.ne.s32.totalorder %s77, %s80
    %p86 = scmp.eq.s32.totalorder %s9, 0
    %p87 = por %p85, %p86
    %p88 = scmp.ne.s32.totalorder %s77, %s80
    %p89 = scmp.eq.s32.totalorder %s14, 1
    %p90 = por %p88, %p89
    %p91 = scmp.ne.s32.totalorder %s80, %s81
    %p92 = scmp.eq.s32.totalorder %s14, 0
    %p93 = por %p91, %p92
    %p94 = scmp.ne.s32.totalorder %s80, %s81
    %p95 = scmp.eq.s32.totalorder %s15, 1
    %p96 = por %p94, %p95
    %p98 = scmp.ne.s32.totalorder %s81, %s97
    %p99 = scmp.eq.s32.totalorder %s15, 0
    %p100 = por %p98, %p99
    %s101 = ssub.s32 %s17, %s38
    %p102 = scmp.eq.s32.totalorder %s101, 0
    %s104 = sadd.s32 %s103, 1
    %s105 = scalar_select %p102, %s103, %s104
    %p108 = pneg %p102
    %p109 = scmp.eq.s32.totalorder %s9, 1
    %p110 = por %p108, %p109
    %p111 = scmp.ne.s32.totalorder %s103, %s106
    %p112 = scmp.eq.s32.totalorder %s9, 0
    %p113 = por %p111, %p112
    %p114 = scmp.ne.s32.totalorder %s103, %s106
    %p115 = scmp.eq.s32.totalorder %s14, 1
    %p116 = por %p114, %p115
    %p117 = scmp.ne.s32.totalorder %s106, %s107
    %p118 = scmp.eq.s32.totalorder %s14, 0
    %p119 = por %p117, %p118
    %p120 = scmp.ne.s32.totalorder %s106, %s107
    %p121 = scmp.eq.s32.totalorder %s15, 1
    %p122 = por %p120, %p121
    %p124 = scmp.ne.s32.totalorder %s107, %s123
    %p125 = scmp.eq.s32.totalorder %s15, 0
    %p126 = por %p124, %p125
    %s127 = ssub.s32 %s16, %s42
    %s128 = ssub.s32 %s17, %s38
    %s129 = sor.u32 %s127, %s128
    %s130 = ssub.s32 %s18, %s34
    %s131 = sor.u32 %s129, %s130
    %p132 = scmp.eq.s32.totalorder %s131, 0
    %s134 = sadd.s32 %s133, 1
    %s135 = scalar_select %p132, %s133, %s134
    %p138 = pneg %p132
    %p139 = scmp.eq.s32.totalorder %s9, 1
    %p140 = por %p138, %p139
    %p141 = scmp.ne.s32.totalorder %s133, %s136
    %p142 = scmp.eq.s32.totalorder %s9, 0
    %p143 = por %p141, %p142
    %p144 = scmp.ne.s32.totalorder %s133, %s136
    %p145 = scmp.eq.s32.totalorder %s14, 1
    %p146 = por %p144, %p145
    %p147 = scmp.ne.s32.totalorder %s136, %s137
    %p148 = scmp.eq.s32.totalorder %s14, 0
    %p149 = por %p147, %p148
    %p150 = scmp.ne.s32.totalorder %s136, %s137
    %p151 = scmp.eq.s32.totalorder %s15, 1
    %p152 = por %p150, %p151
    %p154 = scmp.ne.s32.totalorder %s137, %s153
    %p155 = scmp.eq.s32.totalorder %s15, 0
    %p156 = por %p154, %p155
    %p157 = scmp.le.s32.totalorder 1, %s9
    %p158 = scmp.lt.s32.totalorder %s9, 3
    %p159 = pnand %p157, %p158
    %p160 = pneg %p159
    // Predicated region
    $region9: #{conv2d_pallas.1} parent=5 // pred_check
      _
    $region10: #{conv2d_pallas.1} parent=5 // pred_check_branch
      %162 = sbr.rel (%p159) target = $region12
    $region11: #{conv2d_pallas.1} parent=5 // pred_region
      %s163 = ssub.s32 %s9, 1
      // Predicated region
      $region13: #{conv2d_pallas.1} parent=11 // pred_check
        %p164 = pneg %p63
      $region14: #{conv2d_pallas.1} parent=11 // pred_check_branch
        %166 = sbr.rel (%p164) target = $region16
      $region15: #{conv2d_pallas.1} parent=11 // pred_region
        %s167 = smul.u32 16, %s21
        %p168 = scmp.lt.s32.totalorder %s167, 15
        %s169 = scalar_select %p168, %s167, 15
        %p170 = scmp.lt.s32.totalorder %s23, 0
        %s171 = scalar_select %p170, %s23, 0
        %s172 = sadd.s32 %s171, %s169
        %s173 = smul.addr %s172, 4
        %s174 = scalar_lea.vmem %s0, %s173
        %s175 = smul.u32 16, %s21
      $region16: #{conv2d_pallas.1} parent=11 // pred_fallthru
        _
      // Predicated region
      $region17: #{conv2d_pallas.1} parent=11 // pred_check
        %p176 = pneg %p119
      $region18: #{conv2d_pallas.1} parent=11 // pred_check_branch
        %178 = sbr.rel (%p176) target = $region20
      $region19: #{conv2d_pallas.1} parent=11 // pred_region
        %s179 = smul.u32 16, %s21
        %p180 = scmp.lt.s32.totalorder %s179, 15
        %s181 = scalar_select %p180, %s179, 15
        %s182 = smul.addr %s181, 8
        %s183 = scalar_lea.vmem %s2, %s182
        %s184 = smul.u32 16, %s21
      $region20: #{conv2d_pallas.1} parent=11 // pred_fallthru
        _
    $region12: #{conv2d_pallas.1} parent=5 // pred_fallthru
      _
    %p185 = scmp.lt.s32.totalorder %s9, 2
    // Predicated region
    $region21: #{conv2d_pallas.1} parent=5 // pred_check
      %p186 = pneg %p185
    $region22: #{conv2d_pallas.1} parent=5 // pred_check_branch
      %188 = sbr.rel (%p186) target = $region24
    $region23: #{conv2d_pallas.1} parent=5 // pred_region
      // Predicated region
      $region25: #{conv2d_pallas.1} parent=23 // pred_check
        %p189 = pneg %p87
      $region26: #{conv2d_pallas.1} parent=23 // pred_check_branch
        %191 = sbr.rel (%p189) target = $region28
      $region27: #{conv2d_pallas.1} parent=23 // pred_region
        %s192 = smul.u32 16, %s19
        %s193 = smul.u32 2, %s18
        %p194 = scmp.lt.s32.totalorder %s16, 1
        %s195 = scalar_select %p194, %s16, 1
        %p196 = scmp.lt.s32.totalorder %s192, 15
        %s197 = scalar_select %p196, %s192, 15
        %p198 = scmp.lt.s32.totalorder %s193, 1
        %s199 = scalar_select %p198, %s193, 1
        %s200 = smul.addr %s197, 2
        %s201 = sadd.s32 %s199, %s200
        %s202 = smul.addr %s195, 32
        %s203 = sadd.s32 %s201, %s202
        %s204 = smul.addr %s203, 4
        %s205 = scalar_lea.vmem %s1, %s204
        %s206 = smul.u32 16, %s19
        %s207 = smul.u32 2, %s18
      $region28: #{conv2d_pallas.1} parent=23 // pred_fallthru
        _
    $region24: #{conv2d_pallas.1} parent=5 // pred_fallthru
      _
    %p208 = scmp.le.s32.totalorder 1, %s9
    %p209 = scmp.lt.s32.totalorder %s9, 3
    %p210 = pnand %p208, %p209
    %p211 = pneg %p210
    // Predicated region
    $region29: #{conv2d_pallas.1} parent=5 // pred_check
      _
    $region30: #{conv2d_pallas.1} parent=5 // pred_check_branch
      %213 = sbr.rel (%p210) target = $region32
    $region31: #{conv2d_pallas.1} parent=5 // pred_region
      %s214 = ssub.s32 %s9, 1
      %s215 = smul.u32 16, %s21
      %p216 = scmp.lt.s32.totalorder %s215, 15
      %s217 = scalar_select %p216, %s215, 15
      %p218 = scmp.lt.s32.totalorder %s23, 0
      %s219 = scalar_select %p218, %s23, 0
      %s220 = sadd.s32 %s219, %s217
      %s221 = smul.addr %s220, 4
      %s222 = scalar_lea.vmem %s0, %s221
      %p223 = pneg %p63
      %p224 = pneg %p60
      %s225 = smul.u32 16, %s23
      %s226 = smul.u32 2, %s22
      %p227 = scmp.lt.s32.totalorder %s20, 1
      %s228 = scalar_select %p227, %s20, 1
      %p229 = scmp.lt.s32.totalorder %s225, 15
      %s230 = scalar_select %p229, %s225, 15
      %p231 = scmp.lt.s32.totalorder %s226, 1
      %s232 = scalar_select %p231, %s226, 1
      %s233 = smul.addr %s230, 2
      %s234 = sadd.s32 %s232, %s233
      %s235 = smul.addr %s228, 32
      %s236 = sadd.s32 %s234, %s235
      %s237 = smul.addr %s236, 4
      %s238 = scalar_lea.vmem %s1, %s237
      %p239 = pneg %p93
      %p240 = pneg %p90
      %s241 = smul.u32 16, %s21
      %p242 = scmp.lt.s32.totalorder %s241, 15
      %s243 = scalar_select %p242, %s241, 15
      %s244 = smul.addr %s243, 8
      %s245 = scalar_lea.vmem %s2, %s244
      %p246 = pneg %p119
      %p247 = pneg %p116
      %p248 = pneg %p149
      %p249 = pneg %p146
      %s250 = smul.u32 16, %s21
      %s251 = smul.u32 2, %s22
      %p252 = scmp.lt.s32.totalorder %s20, 1
      %s253 = scalar_select %p252, %s20, 1
      %p254 = scmp.lt.s32.totalorder %s250, 15
      %s255 = scalar_select %p254, %s250, 15
      %p256 = scmp.lt.s32.totalorder %s251, 1
      %s257 = scalar_select %p256, %s251, 1
      %s258 = smul.addr %s255, 2
      %s259 = sadd.s32 %s257, %s258
      %s260 = smul.addr %s253, 32
      %s261 = sadd.s32 %s259, %s260
      %s262 = smul.addr %s261, 8
      %s263 = scalar_lea.vmem %s3, %s262
      %s264 = smul.u32 16, %s21
      %p265 = scmp.lt.s32.totalorder %s264, 15
      %s266 = scalar_select %p265, %s264, 15
      %p267 = scmp.lt.s32.totalorder %s23, 0
      %s268 = scalar_select %p267, %s23, 0
      %s269 = sadd.s32 %s268, %s266
      %s270 = smul.addr %s269, 4
      %s271 = scalar_lea.vmem %s0, %s270
      %s272 = smul.u32 16, %s21
      %s273 = smul.u32 16, %s23
      %s274 = smul.u32 2, %s22
      %p275 = scmp.lt.s32.totalorder %s20, 1
      %s276 = scalar_select %p275, %s20, 1
      %p277 = scmp.lt.s32.totalorder %s273, 15
      %s278 = scalar_select %p277, %s273, 15
      %p279 = scmp.lt.s32.totalorder %s274, 1
      %s280 = scalar_select %p279, %s274, 1
      %s281 = smul.addr %s278, 2
      %s282 = sadd.s32 %s280, %s281
      %s283 = smul.addr %s276, 32
      %s284 = sadd.s32 %s282, %s283
      %s285 = smul.addr %s284, 4
      %s286 = scalar_lea.vmem %s1, %s285
      %s287 = smul.u32 16, %s23
      %s288 = smul.u32 2, %s22
      %s289 = smul.u32 16, %s21
      %p290 = scmp.lt.s32.totalorder %s289, 15
      %s291 = scalar_select %p290, %s289, 15
      %s292 = smul.addr %s291, 8
      %s293 = scalar_lea.vmem %s2, %s292
      %s294 = smul.u32 16, %s21
      %s295 = smul.u32 16, %s21
      %s296 = smul.u32 2, %s22
      %p297 = scmp.lt.s32.totalorder %s20, 1
      %s298 = scalar_select %p297, %s20, 1
      %p299 = scmp.lt.s32.totalorder %s295, 15
      %s300 = scalar_select %p299, %s295, 15
      %p301 = scmp.lt.s32.totalorder %s296, 1
      %s302 = scalar_select %p301, %s296, 1
      %s303 = smul.addr %s300, 2
      %s304 = sadd.s32 %s302, %s303
      %s305 = smul.addr %s298, 32
      %s306 = sadd.s32 %s304, %s305
      %s307 = smul.addr %s306, 8
      %s308 = scalar_lea.vmem %s3, %s307
      %s309 = smul.u32 16, %s21
      %s310 = smul.u32 2, %s22
      %p312 = scmp.eq.s32.totalorder %s23, 0
      // Predicated region
      $region33: #{conv2d_pallas.1} parent=31 // pred_check
        %p313 = pneg %p312
      $region34: #{conv2d_pallas.1} parent=31 // pred_check_branch
        %315 = sbr.rel (%p313) target = $region36
      $region35: #{conv2d_pallas.1} parent=31 // pred_region
        %316 = vst [vmem:[#allocation2] sm:$0xff] 0.0
        %317 = vst [vmem:[#allocation2 + $0x8] sm:$0xff] 0.0
        %318 = vst [vmem:[#allocation2 + $0x10] sm:$0xff] 0.0
        %319 = vst [vmem:[#allocation2 + $0x18] sm:$0xff] 0.0
        %320 = vst [vmem:[#allocation2 + $0x20] sm:$0xff] 0.0
        %321 = vst [vmem:[#allocation2 + $0x28] sm:$0xff] 0.0
        %322 = vst [vmem:[#allocation2 + $0x30] sm:$0xff] 0.0
        %323 = vst [vmem:[#allocation2 + $0x38] sm:$0xff] 0.0
        %324 = vst [vmem:[#allocation2 + $0x40] sm:$0xff] 0.0
        %325 = vst [vmem:[#allocation2 + $0x48] sm:$0xff] 0.0
        %326 = vst [vmem:[#allocation2 + $0x50] sm:$0xff] 0.0
        %327 = vst [vmem:[#allocation2 + $0x58] sm:$0xff] 0.0
        %328 = vst [vmem:[#allocation2 + $0x60] sm:$0xff] 0.0
        %329 = vst [vmem:[#allocation2 + $0x68] sm:$0xff] 0.0
        %330 = vst [vmem:[#allocation2 + $0x70] sm:$0xff] 0.0
        %331 = vst [vmem:[#allocation2 + $0x78] sm:$0xff] 0.0
        %332 = vst [vmem:[#allocation2 + $0x80] sm:$0xff] 0.0
        %333 = vst [vmem:[#allocation2 + $0x88] sm:$0xff] 0.0
        %334 = vst [vmem:[#allocation2 + $0x90] sm:$0xff] 0.0
        %335 = vst [vmem:[#allocation2 + $0x98] sm:$0xff] 0.0
        %336 = vst [vmem:[#allocation2 + $0xa0] sm:$0xff] 0.0
        %337 = vst [vmem:[#allocation2 + $0xa8] sm:$0xff] 0.0
        %338 = vst [vmem:[#allocation2 + $0xb0] sm:$0xff] 0.0
        %339 = vst [vmem:[#allocation2 + $0xb8] sm:$0xff] 0.0
        %340 = vst [vmem:[#allocation2 + $0xc0] sm:$0xff] 0.0
        %341 = vst [vmem:[#allocation2 + $0xc8] sm:$0xff] 0.0
        %342 = vst [vmem:[#allocation2 + $0xd0] sm:$0xff] 0.0
        %343 = vst [vmem:[#allocation2 + $0xd8] sm:$0xff] 0.0
        %344 = vst [vmem:[#allocation2 + $0xe0] sm:$0xff] 0.0
        %345 = vst [vmem:[#allocation2 + $0xe8] sm:$0xff] 0.0
        %346 = vst [vmem:[#allocation2 + $0xf0] sm:$0xff] 0.0
        %347 = vst [vmem:[#allocation2 + $0xf8] sm:$0xff] 0.0
      $region36: #{conv2d_pallas.1} parent=31 // pred_fallthru
        _
      %v348 = vld [vmem:[#allocation2] sm:$0xff]
      %v349 = vld [vmem:[#allocation2 + $0x8] sm:$0xff]
      %v350 = vld [vmem:[#allocation2 + $0x10] sm:$0xff]
      %v351 = vld [vmem:[#allocation2 + $0x18] sm:$0xff]
      %v352 = vld [vmem:[#allocation2 + $0x20] sm:$0xff]
      %v353 = vld [vmem:[#allocation2 + $0x28] sm:$0xff]
      %v354 = vld [vmem:[#allocation2 + $0x30] sm:$0xff]
      %v355 = vld [vmem:[#allocation2 + $0x38] sm:$0xff]
      %v356 = vld [vmem:[#allocation2 + $0x40] sm:$0xff]
      %v357 = vld [vmem:[#allocation2 + $0x48] sm:$0xff]
      %v358 = vld [vmem:[#allocation2 + $0x50] sm:$0xff]
      %v359 = vld [vmem:[#allocation2 + $0x58] sm:$0xff]
      %v360 = vld [vmem:[#allocation2 + $0x60] sm:$0xff]
      %v361 = vld [vmem:[#allocation2 + $0x68] sm:$0xff]
      %v362 = vld [vmem:[#allocation2 + $0x70] sm:$0xff]
      %v363 = vld [vmem:[#allocation2 + $0x78] sm:$0xff]
      %v364 = vld [vmem:[#allocation2 + $0x80] sm:$0xff]
      %v365 = vld [vmem:[#allocation2 + $0x88] sm:$0xff]
      %v366 = vld [vmem:[#allocation2 + $0x90] sm:$0xff]
      %v367 = vld [vmem:[#allocation2 + $0x98] sm:$0xff]
      %v368 = vld [vmem:[#allocation2 + $0xa0] sm:$0xff]
      %v369 = vld [vmem:[#allocation2 + $0xa8] sm:$0xff]
      %v370 = vld [vmem:[#allocation2 + $0xb0] sm:$0xff]
      %v371 = vld [vmem:[#allocation2 + $0xb8] sm:$0xff]
      %v372 = vld [vmem:[#allocation2 + $0xc0] sm:$0xff]
      %v373 = vld [vmem:[#allocation2 + $0xc8] sm:$0xff]
      %v374 = vld [vmem:[#allocation2 + $0xd0] sm:$0xff]
      %v375 = vld [vmem:[#allocation2 + $0xd8] sm:$0xff]
      %v376 = vld [vmem:[#allocation2 + $0xe0] sm:$0xff]
      %v377 = vld [vmem:[#allocation2 + $0xe8] sm:$0xff]
      %v378 = vld [vmem:[#allocation2 + $0xf0] sm:$0xff]
      %v379 = vld [vmem:[#allocation2 + $0xf8] sm:$0xff]
      %v380 = vld [vmem:[%s271] sm:$0xf]
      %v381 = vld [vmem:[%s271 + $0x4] sm:$0xf]
      %v382 = vld [vmem:[%s271 + $0x8] sm:$0xf]
      %v383 = vld [vmem:[%s271 + $0xc] sm:$0xf]
      %v384 = vld [vmem:[%s271 + $0x10] sm:$0xf]
      %v385 = vld [vmem:[%s271 + $0x14] sm:$0xf]
      %v386 = vld [vmem:[%s271 + $0x18] sm:$0xf]
      %v387 = vld [vmem:[%s271 + $0x1c] sm:$0xf]
      %v388 = vld [vmem:[%s271 + $0x20] sm:$0xf]
      %v389 = vld [vmem:[%s271 + $0x24] sm:$0xf]
      %v390 = vld [vmem:[%s271 + $0x28] sm:$0xf]
      %v391 = vld [vmem:[%s271 + $0x2c] sm:$0xf]
      %v392 = vld [vmem:[%s271 + $0x30] sm:$0xf]
      %v393 = vld [vmem:[%s271 + $0x34] sm:$0xf]
      %v394 = vld [vmem:[%s271 + $0x38] sm:$0xf]
      %v395 = vld [vmem:[%s271 + $0x3c] sm:$0xf]
      %v396 = vld [vmem:[%s286] sm:$0xff]
      %v397 = vld [vmem:[%s286 + $0x8] sm:$0xff]
      %v398 = vld [vmem:[%s286 + $0x10] sm:$0xff]
      %v399 = vld [vmem:[%s286 + $0x18] sm:$0xff]
      %v400 = vld [vmem:[%s286 + $0x20] sm:$0xff]
      %v401 = vld [vmem:[%s286 + $0x28] sm:$0xff]
      %v402 = vld [vmem:[%s286 + $0x30] sm:$0xff]
      %v403 = vld [vmem:[%s286 + $0x38] sm:$0xff]
      %v404 = vld [vmem:[%s286 + $0x40] sm:$0xff]
      %v405 = vld [vmem:[%s286 + $0x48] sm:$0xff]
      %v406 = vld [vmem:[%s286 + $0x50] sm:$0xff]
      %v407 = vld [vmem:[%s286 + $0x58] sm:$0xff]
      %v408 = vld [vmem:[%s286 + $0x60] sm:$0xff]
      %v409 = vld [vmem:[%s286 + $0x68] sm:$0xff]
      %v410 = vld [vmem:[%s286 + $0x70] sm:$0xff]
      %v411 = vld [vmem:[%s286 + $0x78] sm:$0xff]
      %v428 = vunpack.c.l.b16 %v380
      %v429 = vunpack.c.l.b16 %v381
      %v430 = vunpack.c.l.b16 %v382
      %v431 = vunpack.c.l.b16 %v383
      %v432 = vunpack.c.l.b16 %v384
      %v433 = vunpack.c.l.b16 %v385
      %v434 = vunpack.c.l.b16 %v386
      %v435 = vunpack.c.l.b16 %v387
      %v436 = vunpack.c.l.b16 %v388
      %v437 = vunpack.c.l.b16 %v389
      %v438 = vunpack.c.l.b16 %v390
      %v439 = vunpack.c.l.b16 %v391
      %v440 = vunpack.c.l.b16 %v392
      %v441 = vunpack.c.l.b16 %v393
      %v442 = vunpack.c.l.b16 %v394
      %v443 = vunpack.c.l.b16 %v395
      %v444 = vpack.c.b16 %v429, %v428
      %v445 = vpack.c.b16 %v431, %v430
      %v446 = vpack.c.b16 %v433, %v432
      %v447 = vpack.c.b16 %v435, %v434
      %v448 = vpack.c.b16 %v437, %v436
      %v449 = vpack.c.b16 %v439, %v438
      %v450 = vpack.c.b16 %v441, %v440
      %v451 = vpack.c.b16 %v443, %v442
      %v476 = vunpack.c.l.b16 %v396
      %v477 = vunpack.c.h.b16 %v396
      %v478 = vunpack.c.l.b16 %v397
      %v479 = vunpack.c.h.b16 %v397
      %v480 = vunpack.c.l.b16 %v398
      %v481 = vunpack.c.h.b16 %v398
      %v482 = vunpack.c.l.b16 %v399
      %v483 = vunpack.c.h.b16 %v399
      %v484 = vunpack.c.l.b16 %v400
      %v485 = vunpack.c.h.b16 %v400
      %v486 = vunpack.c.l.b16 %v401
      %v487 = vunpack.c.h.b16 %v401
      %v488 = vunpack.c.l.b16 %v402
      %v489 = vunpack.c.h.b16 %v402
      %v490 = vunpack.c.l.b16 %v403
      %v491 = vunpack.c.h.b16 %v403
      %v492 = vunpack.c.l.b16 %v404
      %v493 = vunpack.c.h.b16 %v404
      %v494 = vunpack.c.l.b16 %v405
      %v495 = vunpack.c.h.b16 %v405
      %v496 = vunpack.c.l.b16 %v406
      %v497 = vunpack.c.h.b16 %v406
      %v498 = vunpack.c.l.b16 %v407
      %v499 = vunpack.c.h.b16 %v407
      %v500 = vunpack.c.l.b16 %v408
      %v501 = vunpack.c.h.b16 %v408
      %v502 = vunpack.c.l.b16 %v409
      %v503 = vunpack.c.h.b16 %v409
      %v504 = vunpack.c.l.b16 %v410
      %v505 = vunpack.c.h.b16 %v410
      %v506 = vunpack.c.l.b16 %v411
      %v507 = vunpack.c.h.b16 %v411
      %v508 = vpack.c.b16 %v478, %v476
      %v509 = vpack.c.b16 %v479, %v477
      %v510 = vpack.c.b16 %v482, %v480
      %v511 = vpack.c.b16 %v483, %v481
      %v512 = vpack.c.b16 %v486, %v484
      %v513 = vpack.c.b16 %v487, %v485
      %v514 = vpack.c.b16 %v490, %v488
      %v515 = vpack.c.b16 %v491, %v489
      %v516 = vpack.c.b16 %v494, %v492
      %v517 = vpack.c.b16 %v495, %v493
      %v518 = vpack.c.b16 %v498, %v496
      %v519 = vpack.c.b16 %v499, %v497
      %v520 = vpack.c.b16 %v502, %v500
      %v521 = vpack.c.b16 %v503, %v501
      %v522 = vpack.c.b16 %v506, %v504
      %v523 = vpack.c.b16 %v507, %v505
      %540 = vmatprep.subr.bf16.mxu0 %v509
      %541 = vmatpush1.bf16.msra.mxu0 %v508
      %542 = vmatprep.subr.bf16.mxu0 %v511
      %543 = vmatpush1.bf16.msra.mxu0 %v510
      %544 = vmatprep.subr.bf16.mxu0 %v513
      %545 = vmatpush1.bf16.msra.mxu0 %v512
      %546 = vmatprep.subr.bf16.mxu0 %v515
      %547 = vmatpush1.bf16.msra.mxu0 %v514
      %548 = vmatprep.subr.bf16.mxu0 %v517
      %549 = vmatpush1.bf16.msra.mxu0 %v516
      %550 = vmatprep.subr.bf16.mxu0 %v519
      %551 = vmatpush1.bf16.msra.mxu0 %v518
      %552 = vmatprep.subr.bf16.mxu0 %v521
      %553 = vmatpush1.bf16.msra.mxu0 %v520
      %554 = vmatprep.subr.bf16.mxu0 %v523
      %555 = vmatpush1.bf16.msra.mxu0 %v522
      %556 = vmatprep.subr.bf16.mxu0 0
      %557 = vmatpush1.bf16.msra.mxu0 0
      %558 = vmatprep.subr.bf16.mxu0 0
      %559 = vmatpush1.bf16.msra.mxu0 0
      %560 = vmatprep.subr.bf16.mxu0 0
      %561 = vmatpush1.bf16.msra.mxu0 0
      %562 = vmatprep.subr.bf16.mxu0 0
      %563 = vmatpush1.bf16.msra.mxu0 0
      %564 = vmatprep.subr.bf16.mxu0 0
      %565 = vmatpush1.bf16.msra.mxu0 0
      %566 = vmatprep.subr.bf16.mxu0 0
      %567 = vmatpush1.bf16.msra.mxu0 0
      %568 = vmatprep.subr.bf16.mxu0 0
      %569 = vmatpush1.bf16.msra.mxu0 0
      %570 = vmatprep.subr.bf16.mxu0 0
      %571 = vmatpush1.bf16.msra.mxu0 0
      %572 = vmatprep.mubr.bf16.mxu0 0
      %573 = vmatmul.mubr.bf16.gmra.mrb[0].mxu0 %v444
      %v574 = vpop.f32.mrb[0].mxu0
      %v575 = vadd.f32 0.0, %v574
      %v576 = vpop.f32.mrb[0].mxu0
      %v577 = vadd.f32 0.0, %v576
      %v578 = vpop.f32.mrb[0].mxu0
      %v579 = vadd.f32 0.0, %v578
      %v580 = vpop.f32.mrb[0].mxu0
      %v581 = vadd.f32 0.0, %v580
      %582 = vmatprep.mubr.bf16.mxu0 0
      %583 = vmatmul.mubr.bf16.gmra.mrb[0].mxu0 %v445
      %v584 = vpop.f32.mrb[0].mxu0
      %v585 = vadd.f32 0.0, %v584
      %v586 = vpop.f32.mrb[0].mxu0
      %v587 = vadd.f32 0.0, %v586
      %v588 = vpop.f32.mrb[0].mxu0
      %v589 = vadd.f32 0.0, %v588
      %v590 = vpop.f32.mrb[0].mxu0
      %v591 = vadd.f32 0.0, %v590
      %592 = vmatprep.mubr.bf16.mxu0 0
      %593 = vmatmul.mubr.bf16.gmra.mrb[0].mxu0 %v446
      %v594 = vpop.f32.mrb[0].mxu0
      %v595 = vadd.f32 0.0, %v594
      %v596 = vpop.f32.mrb[0].mxu0
      %v597 = vadd.f32 0.0, %v596
      %v598 = vpop.f32.mrb[0].mxu0
      %v599 = vadd.f32 0.0, %v598
      %v600 = vpop.f32.mrb[0].mxu0
      %v601 = vadd.f32 0.0, %v600
      %602 = vmatprep.mubr.bf16.mxu0 0
      %603 = vmatmul.mubr.bf16.gmra.mrb[0].mxu0 %v447
      %v604 = vpop.f32.mrb[0].mxu0
      %v605 = vadd.f32 0.0, %v604
      %v606 = vpop.f32.mrb[0].mxu0
      %v607 = vadd.f32 0.0, %v606
      %v608 = vpop.f32.mrb[0].mxu0
      %v609 = vadd.f32 0.0, %v608
      %v610 = vpop.f32.mrb[0].mxu0
      %v611 = vadd.f32 0.0, %v610
      %612 = vmatprep.mubr.bf16.mxu0 0
      %613 = vmatmul.mubr.bf16.gmra.mrb[0].mxu0 %v448
      %v614 = vpop.f32.mrb[0].mxu0
      %v615 = vadd.f32 0.0, %v614
      %v616 = vpop.f32.mrb[0].mxu0
      %v617 = vadd.f32 0.0, %v616
      %v618 = vpop.f32.mrb[0].mxu0
      %v619 = vadd.f32 0.0, %v618
      %v620 = vpop.f32.mrb[0].mxu0
      %v621 = vadd.f32 0.0, %v620
      %622 = vmatprep.mubr.bf16.mxu0 0
      %623 = vmatmul.mubr.bf16.gmra.mrb[0].mxu0 %v449
      %v624 = vpop.f32.mrb[0].mxu0
      %v625 = vadd.f32 0.0, %v624
      %v626 = vpop.f32.mrb[0].mxu0
      %v627 = vadd.f32 0.0, %v626
      %v628 = vpop.f32.mrb[0].mxu0
      %v629 = vadd.f32 0.0, %v628
      %v630 = vpop.f32.mrb[0].mxu0
      %v631 = vadd.f32 0.0, %v630
      %632 = vmatprep.mubr.bf16.mxu0 0
      %633 = vmatmul.mubr.bf16.gmra.mrb[0].mxu0 %v450
      %v634 = vpop.f32.mrb[0].mxu0
      %v635 = vadd.f32 0.0, %v634
      %v636 = vpop.f32.mrb[0].mxu0
      %v637 = vadd.f32 0.0, %v636
      %v638 = vpop.f32.mrb[0].mxu0
      %v639 = vadd.f32 0.0, %v638
      %v640 = vpop.f32.mrb[0].mxu0
      %v641 = vadd.f32 0.0, %v640
      %642 = vmatprep.mubr.bf16.mxu0 0
      %643 = vmatmul.mubr.bf16.gmra.mrb[0].mxu0 %v451
      %v644 = vpop.f32.mrb[0].mxu0
      %v645 = vadd.f32 0.0, %v644
      %v646 = vpop.f32.mrb[0].mxu0
      %v647 = vadd.f32 0.0, %v646
      %v648 = vpop.f32.mrb[0].mxu0
      %v649 = vadd.f32 0.0, %v648
      %v650 = vpop.f32.mrb[0].mxu0
      %v651 = vadd.f32 0.0, %v650
      %652 = vdwg.mxu0
      %v653 = vadd.f32 %v348, %v575
      %v654 = vadd.f32 %v349, %v577
      %v655 = vadd.f32 %v350, %v579
      %v656 = vadd.f32 %v351, %v581
      %v657 = vadd.f32 %v352, %v585
      %v658 = vadd.f32 %v353, %v587
      %v659 = vadd.f32 %v354, %v589
      %v660 = vadd.f32 %v355, %v591
      %v661 = vadd.f32 %v356, %v595
      %v662 = vadd.f32 %v357, %v597
      %v663 = vadd.f32 %v358, %v599
      %v664 = vadd.f32 %v359, %v601
      %v665 = vadd.f32 %v360, %v605
      %v666 = vadd.f32 %v361, %v607
      %v667 = vadd.f32 %v362, %v609
      %v668 = vadd.f32 %v363, %v611
      %v669 = vadd.f32 %v364, %v615
      %v670 = vadd.f32 %v365, %v617
      %v671 = vadd.f32 %v366, %v619
      %v672 = vadd.f32 %v367, %v621
      %v673 = vadd.f32 %v368, %v625
      %v674 = vadd.f32 %v369, %v627
      %v675 = vadd.f32 %v370, %v629
      %v676 = vadd.f32 %v371, %v631
      %v677 = vadd.f32 %v372, %v635
      %v678 = vadd.f32 %v373, %v637
      %v679 = vadd.f32 %v374, %v639
      %v680 = vadd.f32 %v375, %v641
      %v681 = vadd.f32 %v376, %v645
      %v682 = vadd.f32 %v377, %v647
      %v683 = vadd.f32 %v378, %v649
      %v684 = vadd.f32 %v379, %v651
      %685 = vst [vmem:[#allocation2] sm:$0xff] %v653
      %686 = vst [vmem:[#allocation2 + $0x8] sm:$0xff] %v654
      %687 = vst [vmem:[#allocation2 + $0x10] sm:$0xff] %v655
      %688 = vst [vmem:[#allocation2 + $0x18] sm:$0xff] %v656
      %689 = vst [vmem:[#allocation2 + $0x20] sm:$0xff] %v657
      %690 = vst [vmem:[#allocation2 + $0x28] sm:$0xff] %v658
      %691 = vst [vmem:[#allocation2 + $0x30] sm:$0xff] %v659
      %692 = vst [vmem:[#allocation2 + $0x38] sm:$0xff] %v660
      %693 = vst [vmem:[#allocation2 + $0x40] sm:$0xff] %v661
      %694 = vst [vmem:[#allocation2 + $0x48] sm:$0xff] %v662
      %695 = vst [vmem:[#allocation2 + $0x50] sm:$0xff] %v663
      %696 = vst [vmem:[#allocation2 + $0x58] sm:$0xff] %v664
      %697 = vst [vmem:[#allocation2 + $0x60] sm:$0xff] %v665
      %698 = vst [vmem:[#allocation2 + $0x68] sm:$0xff] %v666
      %699 = vst [vmem:[#allocation2 + $0x70] sm:$0xff] %v667
      %700 = vst [vmem:[#allocation2 + $0x78] sm:$0xff] %v668
      %701 = vst [vmem:[#allocation2 + $0x80] sm:$0xff] %v669
      %702 = vst [vmem:[#allocation2 + $0x88] sm:$0xff] %v670
      %703 = vst [vmem:[#allocation2 + $0x90] sm:$0xff] %v671
      %704 = vst [vmem:[#allocation2 + $0x98] sm:$0xff] %v672
      %705 = vst [vmem:[#allocation2 + $0xa0] sm:$0xff] %v673
      %706 = vst [vmem:[#allocation2 + $0xa8] sm:$0xff] %v674
      %707 = vst [vmem:[#allocation2 + $0xb0] sm:$0xff] %v675
      %708 = vst [vmem:[#allocation2 + $0xb8] sm:$0xff] %v676
      %709 = vst [vmem:[#allocation2 + $0xc0] sm:$0xff] %v677
      %710 = vst [vmem:[#allocation2 + $0xc8] sm:$0xff] %v678
      %711 = vst [vmem:[#allocation2 + $0xd0] sm:$0xff] %v679
      %712 = vst [vmem:[#allocation2 + $0xd8] sm:$0xff] %v680
      %713 = vst [vmem:[#allocation2 + $0xe0] sm:$0xff] %v681
      %714 = vst [vmem:[#allocation2 + $0xe8] sm:$0xff] %v682
      %715 = vst [vmem:[#allocation2 + $0xf0] sm:$0xff] %v683
      %716 = vst [vmem:[#allocation2 + $0xf8] sm:$0xff] %v684
      // Predicated region
      $region37: #{conv2d_pallas.1} parent=31 // pred_check
        %p717 = pneg %p312
      $region38: #{conv2d_pallas.1} parent=31 // pred_check_branch
        %719 = sbr.rel (%p717) target = $region40
      $region39: #{conv2d_pallas.1} parent=31 // pred_region
        %v720 = vld [vmem:[#allocation2] sm:$0xff]
        %v721 = vld [vmem:[#allocation2 + $0x8] sm:$0xff]
        %v722 = vld [vmem:[#allocation2 + $0x10] sm:$0xff]
        %v723 = vld [vmem:[#allocation2 + $0x18] sm:$0xff]
        %v724 = vld [vmem:[#allocation2 + $0x20] sm:$0xff]
        %v725 = vld [vmem:[#allocation2 + $0x28] sm:$0xff]
        %v726 = vld [vmem:[#allocation2 + $0x30] sm:$0xff]
        %v727 = vld [vmem:[#allocation2 + $0x38] sm:$0xff]
        %v728 = vld [vmem:[#allocation2 + $0x40] sm:$0xff]
        %v729 = vld [vmem:[#allocation2 + $0x48] sm:$0xff]
        %v730 = vld [vmem:[#allocation2 + $0x50] sm:$0xff]
        %v731 = vld [vmem:[#allocation2 + $0x58] sm:$0xff]
        %v732 = vld [vmem:[#allocation2 + $0x60] sm:$0xff]
        %v733 = vld [vmem:[#allocation2 + $0x68] sm:$0xff]
        %v734 = vld [vmem:[#allocation2 + $0x70] sm:$0xff]
        %v735 = vld [vmem:[#allocation2 + $0x78] sm:$0xff]
        %v736 = vld [vmem:[#allocation2 + $0x80] sm:$0xff]
        %v737 = vld [vmem:[#allocation2 + $0x88] sm:$0xff]
        %v738 = vld [vmem:[#allocation2 + $0x90] sm:$0xff]
        %v739 = vld [vmem:[#allocation2 + $0x98] sm:$0xff]
        %v740 = vld [vmem:[#allocation2 + $0xa0] sm:$0xff]
        %v741 = vld [vmem:[#allocation2 + $0xa8] sm:$0xff]
        %v742 = vld [vmem:[#allocation2 + $0xb0] sm:$0xff]
        %v743 = vld [vmem:[#allocation2 + $0xb8] sm:$0xff]
        %v744 = vld [vmem:[#allocation2 + $0xc0] sm:$0xff]
        %v745 = vld [vmem:[#allocation2 + $0xc8] sm:$0xff]
        %v746 = vld [vmem:[#allocation2 + $0xd0] sm:$0xff]
        %v747 = vld [vmem:[#allocation2 + $0xd8] sm:$0xff]
        %v748 = vld [vmem:[#allocation2 + $0xe0] sm:$0xff]
        %v749 = vld [vmem:[#allocation2 + $0xe8] sm:$0xff]
        %v750 = vld [vmem:[#allocation2 + $0xf0] sm:$0xff]
        %v751 = vld [vmem:[#allocation2 + $0xf8] sm:$0xff]
        %v752 = vld [vmem:[%s293] sm:$0xff]
        %v753 = vld [vmem:[%s293 + $0x8] sm:$0xff]
        %v754 = vld [vmem:[%s293 + $0x10] sm:$0xff]
        %v755 = vld [vmem:[%s293 + $0x18] sm:$0xff]
        %v756 = vld [vmem:[%s293 + $0x20] sm:$0xff]
        %v757 = vld [vmem:[%s293 + $0x28] sm:$0xff]
        %v758 = vld [vmem:[%s293 + $0x30] sm:$0xff]
        %v759 = vld [vmem:[%s293 + $0x38] sm:$0xff]
        %v760 = vld [vmem:[%s293 + $0x40] sm:$0xff]
        %v761 = vld [vmem:[%s293 + $0x48] sm:$0xff]
        %v762 = vld [vmem:[%s293 + $0x50] sm:$0xff]
        %v763 = vld [vmem:[%s293 + $0x58] sm:$0xff]
        %v764 = vld [vmem:[%s293 + $0x60] sm:$0xff]
        %v765 = vld [vmem:[%s293 + $0x68] sm:$0xff]
        %v766 = vld [vmem:[%s293 + $0x70] sm:$0xff]
        %v767 = vld [vmem:[%s293 + $0x78] sm:$0xff]
        %769 = vset.pattern.permute.xlu0 0
        %770 = vperm.xlu0 %769, %v752
        %v771 = vpop.permute.xlu0 %770
        %774 = vset.pattern.permute.xlu0 0
        %775 = vperm.xlu0 %774, %v753
        %v776 = vpop.permute.xlu0 %775
        %779 = vset.pattern.permute.xlu0 0
        %780 = vperm.xlu0 %779, %v754
        %v781 = vpop.permute.xlu0 %780
        %784 = vset.pattern.permute.xlu0 0
        %785 = vperm.xlu0 %784, %v755
        %v786 = vpop.permute.xlu0 %785
        %789 = vset.pattern.permute.xlu0 0
        %790 = vperm.xlu0 %789, %v756
        %v791 = vpop.permute.xlu0 %790
        %794 = vset.pattern.permute.xlu0 0
        %795 = vperm.xlu0 %794, %v757
        %v796 = vpop.permute.xlu0 %795
        %799 = vset.pattern.permute.xlu0 0
        %800 = vperm.xlu0 %799, %v758
        %v801 = vpop.permute.xlu0 %800
        %804 = vset.pattern.permute.xlu0 0
        %805 = vperm.xlu0 %804, %v759
        %v806 = vpop.permute.xlu0 %805
        %809 = vset.pattern.permute.xlu0 0
        %810 = vperm.xlu0 %809, %v760
        %v811 = vpop.permute.xlu0 %810
        %814 = vset.pattern.permute.xlu0 0
        %815 = vperm.xlu0 %814, %v761
        %v816 = vpop.permute.xlu0 %815
        %819 = vset.pattern.permute.xlu0 0
        %820 = vperm.xlu0 %819, %v762
        %v821 = vpop.permute.xlu0 %820
        %824 = vset.pattern.permute.xlu0 0
        %825 = vperm.xlu0 %824, %v763
        %v826 = vpop.permute.xlu0 %825
        %829 = vset.pattern.permute.xlu0 0
        %830 = vperm.xlu0 %829, %v764
        %v831 = vpop.permute.xlu0 %830
        %834 = vset.pattern.permute.xlu0 0
        %835 = vperm.xlu0 %834, %v765
        %v836 = vpop.permute.xlu0 %835
        %839 = vset.pattern.permute.xlu0 0
        %840 = vperm.xlu0 %839, %v766
        %v841 = vpop.permute.xlu0 %840
        %844 = vset.pattern.permute.xlu0 0
        %845 = vperm.xlu0 %844, %v767
        %v846 = vpop.permute.xlu0 %845
        %v848 = vadd.f32 %v720, %v771
        %v849 = vadd.f32 %v721, %v771
        %v850 = vadd.f32 %v722, %v776
        %v851 = vadd.f32 %v723, %v776
        %v852 = vadd.f32 %v724, %v781
        %v853 = vadd.f32 %v725, %v781
        %v854 = vadd.f32 %v726, %v786
        %v855 = vadd.f32 %v727, %v786
        %v856 = vadd.f32 %v728, %v791
        %v857 = vadd.f32 %v729, %v791
        %v858 = vadd.f32 %v730, %v796
        %v859 = vadd.f32 %v731, %v796
        %v860 = vadd.f32 %v732, %v801
        %v861 = vadd.f32 %v733, %v801
        %v862 = vadd.f32 %v734, %v806
        %v863 = vadd.f32 %v735, %v806
        %v864 = vadd.f32 %v736, %v811
        %v865 = vadd.f32 %v737, %v811
        %v866 = vadd.f32 %v738, %v816
        %v867 = vadd.f32 %v739, %v816
        %v868 = vadd.f32 %v740, %v821
        %v869 = vadd.f32 %v741, %v821
        %v870 = vadd.f32 %v742, %v826
        %v871 = vadd.f32 %v743, %v826
        %v872 = vadd.f32 %v744, %v831
        %v873 = vadd.f32 %v745, %v831
        %v874 = vadd.f32 %v746, %v836
        %v875 = vadd.f32 %v747, %v836
        %v876 = vadd.f32 %v748, %v841
        %v877 = vadd.f32 %v749, %v841
        %v878 = vadd.f32 %v750, %v846
        %v879 = vadd.f32 %v751, %v846
        %880 = vst [vmem:[%s308] sm:$0xff] %v848
        %881 = vst [vmem:[%s308 + $0x8] sm:$0xff] %v849
        %882 = vst [vmem:[%s308 + $0x10] sm:$0xff] %v850
        %883 = vst [vmem:[%s308 + $0x18] sm:$0xff] %v851
        %884 = vst [vmem:[%s308 + $0x20] sm:$0xff] %v852
        %885 = vst [vmem:[%s308 + $0x28] sm:$0xff] %v853
        %886 = vst [vmem:[%s308 + $0x30] sm:$0xff] %v854
        %887 = vst [vmem:[%s308 + $0x38] sm:$0xff] %v855
        %888 = vst [vmem:[%s308 + $0x40] sm:$0xff] %v856
        %889 = vst [vmem:[%s308 + $0x48] sm:$0xff] %v857
        %890 = vst [vmem:[%s308 + $0x50] sm:$0xff] %v858
        %891 = vst [vmem:[%s308 + $0x58] sm:$0xff] %v859
        %892 = vst [vmem:[%s308 + $0x60] sm:$0xff] %v860
        %893 = vst [vmem:[%s308 + $0x68] sm:$0xff] %v861
        %894 = vst [vmem:[%s308 + $0x70] sm:$0xff] %v862
        %895 = vst [vmem:[%s308 + $0x78] sm:$0xff] %v863
        %896 = vst [vmem:[%s308 + $0x80] sm:$0xff] %v864
        %897 = vst [vmem:[%s308 + $0x88] sm:$0xff] %v865
        %898 = vst [vmem:[%s308 + $0x90] sm:$0xff] %v866
        %899 = vst [vmem:[%s308 + $0x98] sm:$0xff] %v867
        %900 = vst [vmem:[%s308 + $0xa0] sm:$0xff] %v868
        %901 = vst [vmem:[%s308 + $0xa8] sm:$0xff] %v869
        %902 = vst [vmem:[%s308 + $0xb0] sm:$0xff] %v870
        %903 = vst [vmem:[%s308 + $0xb8] sm:$0xff] %v871
        %904 = vst [vmem:[%s308 + $0xc0] sm:$0xff] %v872
        %905 = vst [vmem:[%s308 + $0xc8] sm:$0xff] %v873
        %906 = vst [vmem:[%s308 + $0xd0] sm:$0xff] %v874
        %907 = vst [vmem:[%s308 + $0xd8] sm:$0xff] %v875
        %908 = vst [vmem:[%s308 + $0xe0] sm:$0xff] %v876
        %909 = vst [vmem:[%s308 + $0xe8] sm:$0xff] %v877
        %910 = vst [vmem:[%s308 + $0xf0] sm:$0xff] %v878
        %911 = vst [vmem:[%s308 + $0xf8] sm:$0xff] %v879
      $region40: #{conv2d_pallas.1} parent=31 // pred_fallthru
        _
      %s912 = smul.u32 16, %s21
      %s913 = smul.u32 2, %s22
      %p914 = scmp.lt.s32.totalorder %s20, 1
      %s915 = scalar_select %p914, %s20, 1
      %p916 = scmp.lt.s32.totalorder %s912, 15
      %s917 = scalar_select %p916, %s912, 15
      %p918 = scmp.lt.s32.totalorder %s913, 1
      %s919 = scalar_select %p918, %s913, 1
      %s920 = smul.addr %s917, 2
      %s921 = sadd.s32 %s919, %s920
      %s922 = smul.addr %s915, 32
      %s923 = sadd.s32 %s921, %s922
      %s924 = smul.addr %s923, 8
      %s925 = scalar_lea.vmem %s3, %s924
      // Predicated region
      $region41: #{conv2d_pallas.1} parent=31 // pred_check
        %p926 = pneg %p146
      $region42: #{conv2d_pallas.1} parent=31 // pred_check_branch
        %928 = sbr.rel (%p926) target = $region44
      $region43: #{conv2d_pallas.1} parent=31 // pred_region
        %s929 = smul.u32 16, %s21
        %s930 = smul.u32 2, %s22
      $region44: #{conv2d_pallas.1} parent=31 // pred_fallthru
        _
    $region32: #{conv2d_pallas.1} parent=5 // pred_fallthru
      _
    %p931 = scmp.le.s32.totalorder 2, %s9
    // Predicated region
    $region45: #{conv2d_pallas.1} parent=5 // pred_check
      %p932 = pneg %p931
    $region46: #{conv2d_pallas.1} parent=5 // pred_check_branch
      %934 = sbr.rel (%p932) target = $region48
    $region47: #{conv2d_pallas.1} parent=5 // pred_region
      %s935 = ssub.s32 %s9, 2
      // Predicated region
      $region49: #{conv2d_pallas.1} parent=47 // pred_check
        %p936 = pneg %p152
      $region50: #{conv2d_pallas.1} parent=47 // pred_check_branch
        %938 = sbr.rel (%p936) target = $region52
      $region51: #{conv2d_pallas.1} parent=47 // pred_region
        %s939 = smul.u32 16, %s25
        %s940 = smul.u32 2, %s26
        %p941 = scmp.lt.s32.totalorder %s24, 1
        %s942 = scalar_select %p941, %s24, 1
        %p943 = scmp.lt.s32.totalorder %s939, 15
        %s944 = scalar_select %p943, %s939, 15
        %p945 = scmp.lt.s32.totalorder %s940, 1
        %s946 = scalar_select %p945, %s940, 1
        %s947 = smul.addr %s944, 2
        %s948 = sadd.s32 %s946, %s947
        %s949 = smul.addr %s942, 32
        %s950 = sadd.s32 %s948, %s949
        %s951 = smul.addr %s950, 8
        %s952 = scalar_lea.vmem %s3, %s951
      $region52: #{conv2d_pallas.1} parent=47 // pred_fallthru
        _
    $region48: #{conv2d_pallas.1} parent=5 // pred_fallthru
      _
  $region6: #{conv2d_pallas.1} parent=0 // loop_footer
    %s13 = sadd.s32 1, %s9
  $region7: #{conv2d_pallas.1} parent=0 // loop_footer_branch
    %8 = sbr.rel target = $region3
  $region8: #{conv2d_pallas.1} parent=0 // loop_exit
    _

</llo_original>
